<compile_context>
chip_gen: v7x
topology: tpu7x:2x2x1
jax: 0.10.0
libtpu: 0.0.40
codegen_flags: <defaults>
</compile_context>

<pallas_src>
import functools

import jax
import jax.numpy as jnp
from jax.experimental import pallas as pl
from jax.experimental.pallas import tpu as pltpu


def _round_up(n, m):
    return ((n + m - 1) // m) * m


def mlp_kernel(xt_ref, w1_ref, b1_ref, w2_ref, b2_ref, w3_ref, b3_ref, o_ref,
               *, n_chunks=1):
    # Batch-on-lanes layout: every operand / intermediate is lane-dense.
    #   xt_ref : (9,  BT)  compute dtype (bf16 or f32)
    #   w1_ref : (32, 9), w2_ref: (64, 32)        (PyTorch (out, in) layout)
    #   w3_ref : (64, 1)   f32 column (VPU/XLU path for layer 3)
    #   b1_ref : (32, 1), b2_ref: (64, 1)          f32
    #   b3_ref : (1, 1)    f32 scalar in SMEM
    #   o_ref  : (1,  BT)  f32
    cdt = xt_ref.dtype
    bt = o_ref.shape[1]
    ch = bt // n_chunks

    # Hoist the VMEM-resident weights once per tile.
    w1 = w1_ref[...]
    b1 = b1_ref[...]
    w2 = w2_ref[...]
    b2 = b2_ref[...]
    w3 = w3_ref[...]          # (64, 1) f32
    b3 = b3_ref[0, 0]         # scalar (SMEM)

    # Independent lane sub-chunks: the compiler interleaves their dataflow so
    # the MXU push slot stays busy while the previous chunk's VPU epilogue
    # (bias + ReLU + cast) drains.
    for c in range(n_chunks):
        sl = pl.ds(c * ch, ch)
        x = xt_ref[:, sl]                                       # (9, ch)

        # Layer 1 (MXU): (32, 9) @ (9, ch) -> bias -> ReLU.
        h1 = jnp.dot(w1, x, preferred_element_type=jnp.float32)
        h1 = jnp.maximum(h1 + b1, 0.0)

        # Layer 2 (MXU): (64, 32) @ (32, ch) -> bias -> ReLU.
        h2 = jnp.dot(w2, h1.astype(cdt), preferred_element_type=jnp.float32)
        h2 = jnp.maximum(h2 + b2, 0.0)                          # (64, ch) f32

        # Layer 3 OFF the MXU: VPU multiply + 64-sublane XLU reduction.
        # o[lane] = sum_k w3[k] * h2[k, lane] + b3   (exact f32)
        o = jnp.sum(h2 * w3, axis=0, keepdims=True) + b3        # (1, ch)
        o_ref[:, sl] = o.astype(o_ref.dtype)


def mlp_forward(x, params, *, block_b=8192, compute_dtype=jnp.bfloat16,
                n_chunks=None):
    """Pallas forward of Linear(9,32)+ReLU -> Linear(32,64)+ReLU -> Linear(64,1).

    x: (B, 9).  Weights are in PyTorch (out, in) layout, biases as (out, 1).
    compute_dtype=bf16 is the production default (f32 matmuls decompose into
    ~3x more MXU passes); bias/ReLU/layer-3 math is always in f32.
    """
    w1, b1, w2, b2, w3, b3 = params
    B, F = x.shape
    out_dtype = x.dtype

    # ---- Batch tiling -------------------------------------------------------
    # Tiles are multiples of 128 lanes.  Cap the tile at half the padded batch
    # so there are >= 2 tiles whenever possible (keeps both v7x TensorCores
    # busy via the "parallel" grid axis); otherwise use the requested block_b.
    b128 = _round_up(B, 128)
    tile_cap = _round_up(pl.cdiv(b128, 2), 128) if b128 >= 256 else b128
    bt = max(128, min(_round_up(block_b, 128), tile_cap))
    Bp = _round_up(B, bt)
    grid = (Bp // bt,)

    # Intra-tile lane sub-chunks (2-way when the chunk stays 128-aligned).
    if n_chunks is None:
        n_chunks = 2 if (bt >= 256 and bt % 256 == 0) else 1

    # ---- Operand prep (batch on the lane axis) ------------------------------
    # Cast BEFORE transpose/pad so the pre-pass writes bf16, and skip the pad
    # entirely when the batch is already tile-aligned.
    xc = x.astype(compute_dtype)
    if Bp != B:
        xc = jnp.pad(xc, ((0, Bp - B), (0, 0)))
    xt = xc.T                                                   # (F, Bp)

    w1c = w1.astype(compute_dtype)                              # (32, 9)
    w2c = w2.astype(compute_dtype)                              # (64, 32)
    w3col = w3.reshape(-1, 1).astype(jnp.float32)               # (64, 1) f32
    b1f = b1.reshape(-1, 1).astype(jnp.float32)                 # (32, 1)
    b2f = b2.reshape(-1, 1).astype(jnp.float32)                 # (64, 1)
    b3f = b3.reshape(1, 1).astype(jnp.float32)                  # SMEM scalar

    # ---- VMEM budget --------------------------------------------------------
    # Double-buffered x/out tiles + resident weights + f32 h1/h2 temporaries.
    cdt_bytes = jnp.dtype(compute_dtype).itemsize
    vmem_est = (2 * F * bt * cdt_bytes          # x tiles (double-buffered)
                + 2 * bt * 4                    # out tiles (double-buffered)
                + (32 + 64) * bt * 4            # h1/h2 f32 temporaries
                + 64 * 1024)                    # weights/biases (generous)
    vmem_limit = None
    if vmem_est > 12 * 1024 * 1024:             # past v5e's 16 MiB scoped default
        vmem_limit = min(int(vmem_est * 2), 48 * 1024 * 1024)

    # Weights/biases: constant index_map -> stay resident in VMEM across steps.
    const = lambda shape: pl.BlockSpec(shape, lambda i: (0, 0))

    kernel = functools.partial(mlp_kernel, n_chunks=n_chunks)

    out_t = pl.pallas_call(
        kernel,
        out_shape=jax.ShapeDtypeStruct((1, Bp), jnp.float32),
        grid=grid,
        in_specs=[
            pl.BlockSpec((F, bt), lambda i: (0, i)),        # x streams over batch
            const(w1c.shape), const(b1f.shape),
            const(w2c.shape), const(b2f.shape),
            const(w3col.shape),
            pl.BlockSpec(memory_space=pltpu.MemorySpace.SMEM),  # scalar bias b3
        ],
        out_specs=pl.BlockSpec((1, bt), lambda i: (0, i)),  # lane-dense output slab
        compiler_params=pltpu.CompilerParams(
            dimension_semantics=("parallel",),  # shard batch tiles across TCs (v7x)
            vmem_limit_bytes=vmem_limit,
        ),
    )(xt, w1c, b1f, w2c, b2f, w3col, b3f)

    return out_t[0, :B].reshape(B, 1).astype(out_dtype)


def mlp_forward_auto(x, params, *, pallas_min_batch=512, **kw):
    # Dispatch policy: at tiny batch sizes the pallas_call fixed overhead
    # dwarfs the ~20K FLOPs of work, so fall back to plain XLA.
    if x.shape[0] < pallas_min_batch:
        return reference_forward(x, params)
    return mlp_forward(x, params, **kw)


def init_params(key):
    # Deterministic init mimicking nn.Linear defaults (uniform +/- 1/sqrt(fan_in)).
    # Weights stored in PyTorch (out, in) layout; biases as (out, 1).
    def linear(key, fan_in, fan_out):
        k_w, k_b = jax.random.split(key)
        bound = 1.0 / jnp.sqrt(jnp.float32(fan_in))
        w = jax.random.uniform(k_w, (fan_out, fan_in), jnp.float32, -bound, bound)
        b = jax.random.uniform(k_b, (fan_out, 1), jnp.float32, -bound, bound)
        return w, b

    k1, k2, k3 = jax.random.split(key, 3)
    w1, b1 = linear(k1, 9, 32)
    w2, b2 = linear(k2, 32, 64)
    w3, b3 = linear(k3, 64, 1)
    return (w1, b1, w2, b2, w3, b3)


def reference_forward(x, params):
    w1, b1, w2, b2, w3, b3 = params
    dot = functools.partial(jnp.matmul, precision=jax.lax.Precision.HIGHEST)
    h = jnp.maximum(dot(x, w1.T) + b1.T, 0.0)
    h = jnp.maximum(dot(h, w2.T) + b2.T, 0.0)
    return dot(h, w3.T) + b3.T


if __name__ == "__main__":
    key = jax.random.PRNGKey(0)
    k_params, k_x1, k_x2 = jax.random.split(key, 3)
    params = init_params(k_params)

    # Case 1: tiny batch (the module's own regime), f32 compute path,
    # single 128-lane tile.
    x_small = jax.random.normal(k_x1, (8, 9), jnp.float32)
    out_small = jax.block_until_ready(
        mlp_forward(x_small, params, compute_dtype=jnp.float32))
    ref_small = reference_forward(x_small, params)
    assert out_small.shape == (8, 1), out_small.shape
    assert jnp.allclose(out_small, ref_small, atol=5e-3, rtol=5e-3), \
        "f32 path mismatch vs reference"

    # Case 2: batch padding + multi-tile pipeline (2 tiles via the half-batch
    # tile cap) + 2-way intra-tile chunking, default bf16 compute.
    x_big = jax.random.normal(k_x2, (389, 9), jnp.float32)
    out_big = jax.block_until_ready(mlp_forward(x_big, params))
    ref_big = reference_forward(x_big, params)
    assert out_big.shape == (389, 1), out_big.shape
    assert jnp.allclose(out_big, ref_big, atol=2e-2, rtol=2e-2), \
        "bf16 path mismatch vs reference"

    print("KERNEL_OK")
</pallas_src>

<mosaic_0001>
module attributes {stable_mosaic.version = 11 : i64} {
  func.func @mlp_kernel(%arg0: i32, %arg1: memref<9x128xf32, #tpu.memory_space<vmem>>, %arg2: memref<32x9xf32, #tpu.memory_space<vmem>>, %arg3: memref<32x1xf32, #tpu.memory_space<vmem>>, %arg4: memref<64x32xf32, #tpu.memory_space<vmem>>, %arg5: memref<64x1xf32, #tpu.memory_space<vmem>>, %arg6: memref<64x1xf32, #tpu.memory_space<vmem>>, %arg7: memref<1x1xf32, #tpu.memory_space<smem>>, %arg8: memref<1x128xf32, #tpu.memory_space<vmem>>) attributes {dimension_semantics = [#tpu.dimension_semantics<parallel>], iteration_bounds = array<i64: 1>, scalar_prefetch = 0 : i64, scratch_operands = 0 : i64, tpu.core_type = #tpu.core_type<tc>, window_params = [{transform_indices = @transform_0, window_bounds = array<i64: 9, 128>}, {pipeline_mode = #tpu.pipeline_mode<synchronous>, transform_indices = @transform_1, window_bounds = array<i64: 32, 9>}, {pipeline_mode = #tpu.pipeline_mode<synchronous>, transform_indices = @transform_2, window_bounds = array<i64: 32, 1>}, {pipeline_mode = #tpu.pipeline_mode<synchronous>, transform_indices = @transform_3, window_bounds = array<i64: 64, 32>}, {pipeline_mode = #tpu.pipeline_mode<synchronous>, transform_indices = @transform_4, window_bounds = array<i64: 64, 1>}, {pipeline_mode = #tpu.pipeline_mode<synchronous>, transform_indices = @transform_5, window_bounds = array<i64: 64, 1>}, {transform_indices = @transform_6, window_bounds = array<i64: 1, 1>}, {transform_indices = @transform_7, window_bounds = array<i64: 1, 128>}]} {
    %c0 = arith.constant 0 : index
    %c0_0 = arith.constant 0 : index
    %0 = vector.load %arg2[%c0, %c0_0] : memref<32x9xf32, #tpu.memory_space<vmem>>, vector<32x9xf32>
    %c0_1 = arith.constant 0 : index
    %c0_2 = arith.constant 0 : index
    %1 = vector.load %arg3[%c0_1, %c0_2] : memref<32x1xf32, #tpu.memory_space<vmem>>, vector<32x1xf32>
    %c0_3 = arith.constant 0 : index
    %c0_4 = arith.constant 0 : index
    %2 = vector.load %arg4[%c0_3, %c0_4] : memref<64x32xf32, #tpu.memory_space<vmem>>, vector<64x32xf32>
    %c0_5 = arith.constant 0 : index
    %c0_6 = arith.constant 0 : index
    %3 = vector.load %arg5[%c0_5, %c0_6] : memref<64x1xf32, #tpu.memory_space<vmem>>, vector<64x1xf32>
    %c0_7 = arith.constant 0 : index
    %c0_8 = arith.constant 0 : index
    %4 = vector.load %arg6[%c0_7, %c0_8] : memref<64x1xf32, #tpu.memory_space<vmem>>, vector<64x1xf32>
    %c0_9 = arith.constant 0 : index
    %c0_10 = arith.constant 0 : index
    %5 = memref.load %arg7[%c0_9, %c0_10] : memref<1x1xf32, #tpu.memory_space<smem>>
    %c0_11 = arith.constant 0 : index
    %c0_12 = arith.constant 0 : index
    %6 = vector.load %arg1[%c0_11, %c0_12] : memref<9x128xf32, #tpu.memory_space<vmem>>, vector<9x128xf32>
    %cst = arith.constant dense<0.000000e+00> : vector<32x128xf32>
    %7 = tpu.matmul %0, %6, %cst {dimension_numbers = #tpu.dot_dimension_numbers<[1], [0], [0], [1], [0, 0, 1, 1], [], []>} : vector<32x9xf32>, vector<9x128xf32>, vector<32x128xf32> -> vector<32x128xf32>
    %8 = vector.broadcast %1 : vector<32x1xf32> to vector<32x128xf32>
    %9 = arith.addf %7, %8 : vector<32x128xf32>
    %cst_13 = arith.constant 0.000000e+00 : f32
    %10 = vector.broadcast %cst_13 : f32 to vector<32x128xf32>
    %11 = arith.maximumf %9, %10 : vector<32x128xf32>
    %cst_14 = arith.constant dense<0.000000e+00> : vector<64x128xf32>
    %12 = tpu.matmul %2, %11, %cst_14 {dimension_numbers = #tpu.dot_dimension_numbers<[1], [0], [0], [1], [0, 0, 1, 1], [], []>} : vector<64x32xf32>, vector<32x128xf32>, vector<64x128xf32> -> vector<64x128xf32>
    %13 = vector.broadcast %3 : vector<64x1xf32> to vector<64x128xf32>
    %14 = arith.addf %12, %13 : vector<64x128xf32>
    %cst_15 = arith.constant 0.000000e+00 : f32
    %15 = vector.broadcast %cst_15 : f32 to vector<64x128xf32>
    %16 = arith.maximumf %14, %15 : vector<64x128xf32>
    %17 = vector.broadcast %4 : vector<64x1xf32> to vector<64x128xf32>
    %18 = arith.mulf %16, %17 : vector<64x128xf32>
    %cst_16 = arith.constant dense<0.000000e+00> : vector<128xf32>
    %19 = vector.multi_reduction <add>, %18, %cst_16 [0] : vector<64x128xf32> to vector<128xf32>
    %20 = vector.shape_cast %19 : vector<128xf32> to vector<1x128xf32>
    %21 = vector.broadcast %5 : f32 to vector<1x128xf32>
    %22 = arith.addf %20, %21 : vector<1x128xf32>
    %c0_17 = arith.constant 0 : index
    %c0_18 = arith.constant 0 : index
    %23 = vector.load %arg8[%c0_17, %c0_18] : memref<1x128xf32, #tpu.memory_space<vmem>>, vector<1x128xf32>
    tpu.vector_store %arg8[%c0_17, %c0_18], %22 {strides = array<i32>} : memref<1x128xf32, #tpu.memory_space<vmem>>, vector<1x128xf32>,
    return
  }
  func.func @transform_0(%arg0: i32) -> (i32, i32) {
    %c0_i32 = arith.constant 0 : i32
    %c0_i32_0 = arith.constant 0 : i32
    return %c0_i32, %arg0 : i32, i32
  }
  func.func @transform_1(%arg0: i32) -> (i32, i32) {
    %c0_i32 = arith.constant 0 : i32
    %c0_i32_0 = arith.constant 0 : i32
    %c0_i32_1 = arith.constant 0 : i32
    return %c0_i32, %c0_i32_0 : i32, i32
  }
  func.func @transform_2(%arg0: i32) -> (i32, i32) {
    %c0_i32 = arith.constant 0 : i32
    %c0_i32_0 = arith.constant 0 : i32
    %c0_i32_1 = arith.constant 0 : i32
    return %c0_i32, %c0_i32_0 : i32, i32
  }
  func.func @transform_3(%arg0: i32) -> (i32, i32) {
    %c0_i32 = arith.constant 0 : i32
    %c0_i32_0 = arith.constant 0 : i32
    %c0_i32_1 = arith.constant 0 : i32
    return %c0_i32, %c0_i32_0 : i32, i32
  }
  func.func @transform_4(%arg0: i32) -> (i32, i32) {
    %c0_i32 = arith.constant 0 : i32
    %c0_i32_0 = arith.constant 0 : i32
    %c0_i32_1 = arith.constant 0 : i32
    return %c0_i32, %c0_i32_0 : i32, i32
  }
  func.func @transform_5(%arg0: i32) -> (i32, i32) {
    %c0_i32 = arith.constant 0 : i32
    %c0_i32_0 = arith.constant 0 : i32
    %c0_i32_1 = arith.constant 0 : i32
    return %c0_i32, %c0_i32_0 : i32, i32
  }
  func.func @transform_6(%arg0: i32) -> (i32, i32) {
    %c0_i32 = arith.constant 0 : i32
    %c0_i32_0 = arith.constant 0 : i32
    %c0_i32_1 = arith.constant 0 : i32
    return %c0_i32, %c0_i32_0 : i32, i32
  }
  func.func @transform_7(%arg0: i32) -> (i32, i32) {
    %c0_i32 = arith.constant 0 : i32
    %c0_i32_0 = arith.constant 0 : i32
    return %c0_i32, %arg0 : i32, i32
  }
}

</mosaic_0001>

<llo_original>
// kernel: tpu_custom_call.1
$region0: #{tpu_custom_call.1}
  #allocation0 [shape = 'u32[]', space=smem, size = 0x4, offset = 0x4, fixed_abs, tag = 'smem constant byte address 0x4 - core index']
  #allocation1 [shape = 'u32[144,128]{1,0:T(1,128)}', space=vmem, size = 0x12000, scoped, tag = 'internal scratch']
  #allocation2 [shape = 'f32[1,1]{1,0:T(1,128)S(6)}', space=smem, size = 0x200, scoped, tag = 'scoped memory for tpu_custom_call.1']
  %s0 = inlined_call_operand.vmem [shape: f32[9,128], index: 0, kind: input, shape index: {}]
  %s1 = inlined_call_operand.vmem [shape: f32[32,9], index: 1, kind: input, shape index: {}]
  %s2 = inlined_call_operand.vmem [shape: f32[32,1], index: 2, kind: input, shape index: {}]
  %s3 = inlined_call_operand.vmem [shape: f32[64,32], index: 3, kind: input, shape index: {}]
  %s4 = inlined_call_operand.vmem [shape: f32[64,1], index: 4, kind: input, shape index: {}]
  %s5 = inlined_call_operand.vmem [shape: f32[64,1], index: 5, kind: input, shape index: {}]
  %s6 = inlined_call_operand.<no memory space> [shape: f32[1,1], index: 6, kind: input, shape index: {}]
  %s7 = inlined_call_operand.hbm [shape: f32[1,128], index: 7, kind: output, shape index: {}]
  %s8 = sld [smem:[#allocation0]]
  $region38: #{tpu_custom_call.1} parent=0
    _
  %s10 = ssub.s32 1, %s8
  %s11 = scalar_select 0, %s10, %s8
  %12 = sst [smem:[#allocation2]] %s6
  $region1: #{tpu_custom_call.1} parent=0
    #allocation3 [shape = 'u8[512]{0}', space=vmem, size = 0x400, scoped, tag = 'output window, operand 0, single buffered']
    #allocation4 [shape = 's32[1]{0}', space=sflag, size = 0x4, scoped, tag = 'scoped memory for tpu_custom_call.1']
    %13 = vsyncpa [#allocation4], 0
    // Predicated region
    $region2: #{tpu_custom_call.1} parent=1 // pred_check
      _
    $region3: #{tpu_custom_call.1} parent=1 // pred_check_branch
      %15 = sbr.rel (0) target = $region5
    $region4: #{tpu_custom_call.1} parent=1 // pred_region
      _
    $region5: #{tpu_custom_call.1} parent=1 // pred_fallthru
      _
    // Predicated region
    $region6: #{tpu_custom_call.1} parent=1 // pred_check
      _
    $region7: #{tpu_custom_call.1} parent=1 // pred_check_branch
      %17 = sbr.rel (0) target = $region9
    $region8: #{tpu_custom_call.1} parent=1 // pred_region
      _
    $region9: #{tpu_custom_call.1} parent=1 // pred_fallthru
      _
    // Predicated region
    $region10: #{tpu_custom_call.1} parent=1 // pred_check
      _
    $region11: #{tpu_custom_call.1} parent=1 // pred_check_branch
      %19 = sbr.rel (0) target = $region13
    $region12: #{tpu_custom_call.1} parent=1 // pred_region
      _
    $region13: #{tpu_custom_call.1} parent=1 // pred_fallthru
      _
    // Predicated region
    $region14: #{tpu_custom_call.1} parent=1 // pred_check
      _
    $region15: #{tpu_custom_call.1} parent=1 // pred_check_branch
      %21 = sbr.rel (0) target = $region17
    $region16: #{tpu_custom_call.1} parent=1 // pred_region
      _
    $region17: #{tpu_custom_call.1} parent=1 // pred_fallthru
      _
    // Predicated region
    $region18: #{tpu_custom_call.1} parent=1 // pred_check
      _
    $region19: #{tpu_custom_call.1} parent=1 // pred_check_branch
      %23 = sbr.rel (0) target = $region21
    $region20: #{tpu_custom_call.1} parent=1 // pred_region
      _
    $region21: #{tpu_custom_call.1} parent=1 // pred_fallthru
      _
    // Predicated region
    $region22: #{tpu_custom_call.1} parent=1 // pred_check
      _
    $region23: #{tpu_custom_call.1} parent=1 // pred_check_branch
      %25 = sbr.rel (0) target = $region25
    $region24: #{tpu_custom_call.1} parent=1 // pred_region
      _
    $region25: #{tpu_custom_call.1} parent=1 // pred_fallthru
      _
    // Predicated region
    $region26: #{tpu_custom_call.1} parent=1 // pred_check
      _
    $region27: #{tpu_custom_call.1} parent=1 // pred_check_branch
      %27 = sbr.rel (0) target = $region29
    $region28: #{tpu_custom_call.1} parent=1 // pred_region
      _
    $region29: #{tpu_custom_call.1} parent=1 // pred_fallthru
      _
    %v28 = vld [vmem:[%s1] sm:$0xff]
    %v29 = vld [vmem:[%s1 + $0x8] sm:$0xff]
    %v30 = vld [vmem:[%s1 + $0x10] sm:$0xff]
    %v31 = vld [vmem:[%s1 + $0x18] sm:$0xff]
    %v32 = vld [vmem:[%s2] sm:$0xff]
    %v33 = vld [vmem:[%s2 + $0x8] sm:$0xff]
    %v34 = vld [vmem:[%s2 + $0x10] sm:$0xff]
    %v35 = vld [vmem:[%s2 + $0x18] sm:$0xff]
    %v36 = vld [vmem:[%s3] sm:$0xff]
    %v37 = vld [vmem:[%s3 + $0x8] sm:$0xff]
    %v38 = vld [vmem:[%s3 + $0x10] sm:$0xff]
    %v39 = vld [vmem:[%s3 + $0x18] sm:$0xff]
    %v40 = vld [vmem:[%s3 + $0x20] sm:$0xff]
    %v41 = vld [vmem:[%s3 + $0x28] sm:$0xff]
    %v42 = vld [vmem:[%s3 + $0x30] sm:$0xff]
    %v43 = vld [vmem:[%s3 + $0x38] sm:$0xff]
    %v44 = vld [vmem:[%s4] sm:$0xff]
    %v45 = vld [vmem:[%s4 + $0x8] sm:$0xff]
    %v46 = vld [vmem:[%s4 + $0x10] sm:$0xff]
    %v47 = vld [vmem:[%s4 + $0x18] sm:$0xff]
    %v48 = vld [vmem:[%s4 + $0x20] sm:$0xff]
    %v49 = vld [vmem:[%s4 + $0x28] sm:$0xff]
    %v50 = vld [vmem:[%s4 + $0x30] sm:$0xff]
    %v51 = vld [vmem:[%s4 + $0x38] sm:$0xff]
    %v52 = vld [vmem:[%s5] sm:$0xff]
    %v53 = vld [vmem:[%s5 + $0x8] sm:$0xff]
    %v54 = vld [vmem:[%s5 + $0x10] sm:$0xff]
    %v55 = vld [vmem:[%s5 + $0x18] sm:$0xff]
    %v56 = vld [vmem:[%s5 + $0x20] sm:$0xff]
    %v57 = vld [vmem:[%s5 + $0x28] sm:$0xff]
    %v58 = vld [vmem:[%s5 + $0x30] sm:$0xff]
    %v59 = vld [vmem:[%s5 + $0x38] sm:$0xff]
    %s60 = sld [smem:[#allocation2]]
    %v61 = vld [vmem:[%s0] sm:$0xff]
    %v62 = vld [vmem:[%s0 + $0x8] sm:$0x1]
    %64 = vset.pattern.permute.xlu0 0
    %65 = vperm.xlu0 %64, %v32
    %v66 = vpop.permute.xlu0 %65
    %69 = vset.pattern.permute.xlu0 0
    %70 = vperm.xlu0 %69, %v33
    %v71 = vpop.permute.xlu0 %70
    %74 = vset.pattern.permute.xlu0 0
    %75 = vperm.xlu0 %74, %v34
    %v76 = vpop.permute.xlu0 %75
    %79 = vset.pattern.permute.xlu0 0
    %80 = vperm.xlu0 %79, %v35
    %v81 = vpop.permute.xlu0 %80
    %vm83 = vcmask 72704
    %v85 = vsel %vm83, %v28, 0
    %v88 = vsel %vm83, %v29, 0
    %v91 = vsel %vm83, %v30, 0
    %v94 = vsel %vm83, %v31, 0
    %vm96 = vcmask 1040384
    %v98 = vsel %vm96, %v62, 0
    %100 = vmatprep.subr.mxu0 0.0
    %101 = vmatpush1.msra.mxu0 %v61
    %102 = vmatprep.subr.mxu0 0.0
    %103 = vmatpush1.msra.mxu0 %v98
    %104 = vmatprep.subr.mxu0 0.0
    %105 = vmatpush1.msra.mxu0 0.0
    %106 = vmatprep.subr.mxu0 0.0
    %107 = vmatpush1.msra.mxu0 0.0
    %108 = vmatprep.subr.mxu0 0.0
    %109 = vmatpush1.msra.mxu0 0.0
    %110 = vmatprep.subr.mxu0 0.0
    %111 = vmatpush1.msra.mxu0 0.0
    %112 = vmatprep.subr.mxu0 0.0
    %113 = vmatpush1.msra.mxu0 0.0
    %114 = vmatprep.subr.mxu0 0.0
    %115 = vmatpush1.msra.mxu0 0.0
    %116 = vmatprep.subr.mxu0 0.0
    %117 = vmatpush1.msra.mxu0 0.0
    %118 = vmatprep.subr.mxu0 0.0
    %119 = vmatpush1.msra.mxu0 0.0
    %120 = vmatprep.subr.mxu0 0.0
    %121 = vmatpush1.msra.mxu0 0.0
    %122 = vmatprep.subr.mxu0 0.0
    %123 = vmatpush1.msra.mxu0 0.0
    %124 = vmatprep.subr.mxu0 0.0
    %125 = vmatpush1.msra.mxu0 0.0
    %126 = vmatprep.subr.mxu0 0.0
    %127 = vmatpush1.msra.mxu0 0.0
    %128 = vmatprep.subr.mxu0 0.0
    %129 = vmatpush1.msra.mxu0 0.0
    %130 = vmatprep.subr.mxu0 0.0
    %131 = vmatpush1.msra.mxu0 0.0
    %132 = vmatprep.subr.mxu0 0.0
    %133 = vmatpush1.msra.mxu0 0.0
    %134 = vmatprep.subr.mxu0 0.0
    %135 = vmatpush1.msra.mxu0 0.0
    %136 = vmatprep.subr.mxu0 0.0
    %137 = vmatpush1.msra.mxu0 0.0
    %138 = vmatprep.subr.mxu0 0.0
    %139 = vmatpush1.msra.mxu0 0.0
    %140 = vmatprep.subr.mxu0 0.0
    %141 = vmatpush1.msra.mxu0 0.0
    %142 = vmatprep.subr.mxu0 0.0
    %143 = vmatpush1.msra.mxu0 0.0
    %144 = vmatprep.subr.mxu0 0.0
    %145 = vmatpush1.msra.mxu0 0.0
    %146 = vmatprep.subr.mxu0 0.0
    %147 = vmatpush1.msra.mxu0 0.0
    %148 = vmatprep.subr.mxu0 0.0
    %149 = vmatpush1.msra.mxu0 0.0
    %150 = vmatprep.subr.mxu0 0.0
    %151 = vmatpush1.msra.mxu0 0.0
    %152 = vmatprep.subr.mxu0 0.0
    %153 = vmatpush1.msra.mxu0 0.0
    %154 = vmatprep.subr.mxu0 0.0
    %155 = vmatpush1.msra.mxu0 0.0
    %156 = vmatprep.subr.mxu0 0.0
    %157 = vmatpush1.msra.mxu0 0.0
    %158 = vmatprep.subr.mxu0 0.0
    %159 = vmatpush1.msra.mxu0 0.0
    %160 = vmatprep.subr.mxu0 0.0
    %161 = vmatpush1.msra.mxu0 0.0
    %162 = vmatprep.subr.mxu0 0.0
    %163 = vmatpush1.msra.mxu0 0.0
    %164 = vmatprep.mubr.f32.mxu0 0.0
    %165 = vmatmul.mubr.f32.gmra.mrb[0].mxu0 %v85
    %v166 = vpop.f32.mrb[0].mxu0
    %v167 = vadd.f32 %v66, %v166
    %v168 = vpop.f32.mrb[0].mxu0
    %169 = vmatprep.mubr.f32.mxu0 0.0
    %170 = vmatmul.mubr.f32.gmra.mrb[0].mxu0 %v88
    %v171 = vpop.f32.mrb[0].mxu0
    %v172 = vadd.f32 %v71, %v171
    %v173 = vpop.f32.mrb[0].mxu0
    %174 = vmatprep.mubr.f32.mxu0 0.0
    %175 = vmatmul.mubr.f32.gmra.mrb[0].mxu0 %v91
    %v176 = vpop.f32.mrb[0].mxu0
    %v177 = vadd.f32 %v76, %v176
    %v178 = vpop.f32.mrb[0].mxu0
    %179 = vmatprep.mubr.f32.mxu0 0.0
    %180 = vmatmul.mubr.f32.gmra.mrb[0].mxu0 %v94
    %v181 = vpop.f32.mrb[0].mxu0
    %v182 = vadd.f32 %v81, %v181
    %v183 = vpop.f32.mrb[0].mxu0
    %184 = vdwg.mxu0
    %v185 = vmax.f32 %v167, 0.0
    %v186 = vmax.f32 %v172, 0.0
    %v187 = vmax.f32 %v177, 0.0
    %v188 = vmax.f32 %v182, 0.0
    %190 = vset.pattern.permute.xlu0 0
    %191 = vperm.xlu0 %190, %v44
    %v192 = vpop.permute.xlu0 %191
    %195 = vset.pattern.permute.xlu0 0
    %196 = vperm.xlu0 %195, %v45
    %v197 = vpop.permute.xlu0 %196
    %200 = vset.pattern.permute.xlu0 0
    %201 = vperm.xlu0 %200, %v46
    %v202 = vpop.permute.xlu0 %201
    %205 = vset.pattern.permute.xlu0 0
    %206 = vperm.xlu0 %205, %v47
    %v207 = vpop.permute.xlu0 %206
    %210 = vset.pattern.permute.xlu0 0
    %211 = vperm.xlu0 %210, %v48
    %v212 = vpop.permute.xlu0 %211
    %215 = vset.pattern.permute.xlu0 0
    %216 = vperm.xlu0 %215, %v49
    %v217 = vpop.permute.xlu0 %216
    %220 = vset.pattern.permute.xlu0 0
    %221 = vperm.xlu0 %220, %v50
    %v222 = vpop.permute.xlu0 %221
    %225 = vset.pattern.permute.xlu0 0
    %226 = vperm.xlu0 %225, %v51
    %v227 = vpop.permute.xlu0 %226
    %vm229 = vcmask 261120
    %v231 = vsel %vm229, %v36, 0
    %v234 = vsel %vm229, %v37, 0
    %v237 = vsel %vm229, %v38, 0
    %v240 = vsel %vm229, %v39, 0
    %v243 = vsel %vm229, %v40, 0
    %v246 = vsel %vm229, %v41, 0
    %v249 = vsel %vm229, %v42, 0
    %v252 = vsel %vm229, %v43, 0
    %254 = vmatprep.subr.mxu0 0.0
    %255 = vmatpush1.msra.mxu0 %v185
    %256 = vmatprep.subr.mxu0 0.0
    %257 = vmatpush1.msra.mxu0 %v186
    %258 = vmatprep.subr.mxu0 0.0
    %259 = vmatpush1.msra.mxu0 %v187
    %260 = vmatprep.subr.mxu0 0.0
    %261 = vmatpush1.msra.mxu0 %v188
    %262 = vmatprep.subr.mxu0 0.0
    %263 = vmatpush1.msra.mxu0 0.0
    %264 = vmatprep.subr.mxu0 0.0
    %265 = vmatpush1.msra.mxu0 0.0
    %266 = vmatprep.subr.mxu0 0.0
    %267 = vmatpush1.msra.mxu0 0.0
    %268 = vmatprep.subr.mxu0 0.0
    %269 = vmatpush1.msra.mxu0 0.0
    %270 = vmatprep.subr.mxu0 0.0
    %271 = vmatpush1.msra.mxu0 0.0
    %272 = vmatprep.subr.mxu0 0.0
    %273 = vmatpush1.msra.mxu0 0.0
    %274 = vmatprep.subr.mxu0 0.0
    %275 = vmatpush1.msra.mxu0 0.0
    %276 = vmatprep.subr.mxu0 0.0
    %277 = vmatpush1.msra.mxu0 0.0
    %278 = vmatprep.subr.mxu0 0.0
    %279 = vmatpush1.msra.mxu0 0.0
    %280 = vmatprep.subr.mxu0 0.0
    %281 = vmatpush1.msra.mxu0 0.0
    %282 = vmatprep.subr.mxu0 0.0
    %283 = vmatpush1.msra.mxu0 0.0
    %284 = vmatprep.subr.mxu0 0.0
    %285 = vmatpush1.msra.mxu0 0.0
    %286 = vmatprep.subr.mxu0 0.0
    %287 = vmatpush1.msra.mxu0 0.0
    %288 = vmatprep.subr.mxu0 0.0
    %289 = vmatpush1.msra.mxu0 0.0
    %290 = vmatprep.subr.mxu0 0.0
    %291 = vmatpush1.msra.mxu0 0.0
    %292 = vmatprep.subr.mxu0 0.0
    %293 = vmatpush1.msra.mxu0 0.0
    %294 = vmatprep.subr.mxu0 0.0
    %295 = vmatpush1.msra.mxu0 0.0
    %296 = vmatprep.subr.mxu0 0.0
    %297 = vmatpush1.msra.mxu0 0.0
    %298 = vmatprep.subr.mxu0 0.0
    %299 = vmatpush1.msra.mxu0 0.0
    %300 = vmatprep.subr.mxu0 0.0
    %301 = vmatpush1.msra.mxu0 0.0
    %302 = vmatprep.subr.mxu0 0.0
    %303 = vmatpush1.msra.mxu0 0.0
    %304 = vmatprep.subr.mxu0 0.0
    %305 = vmatpush1.msra.mxu0 0.0
    %306 = vmatprep.subr.mxu0 0.0
    %307 = vmatpush1.msra.mxu0 0.0
    %308 = vmatprep.subr.mxu0 0.0
    %309 = vmatpush1.msra.mxu0 0.0
    %310 = vmatprep.subr.mxu0 0.0
    %311 = vmatpush1.msra.mxu0 0.0
    %312 = vmatprep.subr.mxu0 0.0
    %313 = vmatpush1.msra.mxu0 0.0
    %314 = vmatprep.subr.mxu0 0.0
    %315 = vmatpush1.msra.mxu0 0.0
    %316 = vmatprep.subr.mxu0 0.0
    %317 = vmatpush1.msra.mxu0 0.0
    %318 = vmatprep.mubr.f32.mxu0 0.0
    %319 = vmatmul.mubr.f32.gmra.mrb[0].mxu0 %v231
    %v320 = vpop.f32.mrb[0].mxu0
    %v321 = vadd.f32 %v192, %v320
    %v322 = vpop.f32.mrb[0].mxu0
    %323 = vmatprep.mubr.f32.mxu0 0.0
    %324 = vmatmul.mubr.f32.gmra.mrb[0].mxu0 %v234
    %v325 = vpop.f32.mrb[0].mxu0
    %v326 = vadd.f32 %v197, %v325
    %v327 = vpop.f32.mrb[0].mxu0
    %328 = vmatprep.mubr.f32.mxu0 0.0
    %329 = vmatmul.mubr.f32.gmra.mrb[0].mxu0 %v237
    %v330 = vpop.f32.mrb[0].mxu0
    %v331 = vadd.f32 %v202, %v330
    %v332 = vpop.f32.mrb[0].mxu0
    %333 = vmatprep.mubr.f32.mxu0 0.0
    %334 = vmatmul.mubr.f32.gmra.mrb[0].mxu0 %v240
    %v335 = vpop.f32.mrb[0].mxu0
    %v336 = vadd.f32 %v207, %v335
    %v337 = vpop.f32.mrb[0].mxu0
    %338 = vmatprep.mubr.f32.mxu0 0.0
    %339 = vmatmul.mubr.f32.gmra.mrb[0].mxu0 %v243
    %v340 = vpop.f32.mrb[0].mxu0
    %v341 = vadd.f32 %v212, %v340
    %v342 = vpop.f32.mrb[0].mxu0
    %343 = vmatprep.mubr.f32.mxu0 0.0
    %344 = vmatmul.mubr.f32.gmra.mrb[0].mxu0 %v246
    %v345 = vpop.f32.mrb[0].mxu0
    %v346 = vadd.f32 %v217, %v345
    %v347 = vpop.f32.mrb[0].mxu0
    %348 = vmatprep.mubr.f32.mxu0 0.0
    %349 = vmatmul.mubr.f32.gmra.mrb[0].mxu0 %v249
    %v350 = vpop.f32.mrb[0].mxu0
    %v351 = vadd.f32 %v222, %v350
    %v352 = vpop.f32.mrb[0].mxu0
    %353 = vmatprep.mubr.f32.mxu0 0.0
    %354 = vmatmul.mubr.f32.gmra.mrb[0].mxu0 %v252
    %v355 = vpop.f32.mrb[0].mxu0
    %v356 = vadd.f32 %v227, %v355
    %v357 = vpop.f32.mrb[0].mxu0
    %358 = vdwg.mxu0
    %v359 = vmax.f32 %v321, 0.0
    %v360 = vmax.f32 %v326, 0.0
    %v361 = vmax.f32 %v331, 0.0
    %v362 = vmax.f32 %v336, 0.0
    %v363 = vmax.f32 %v341, 0.0
    %v364 = vmax.f32 %v346, 0.0
    %v365 = vmax.f32 %v351, 0.0
    %v366 = vmax.f32 %v356, 0.0
    %368 = vset.pattern.permute.xlu0 0
    %369 = vperm.xlu0 %368, %v52
    %v370 = vpop.permute.xlu0 %369
    %373 = vset.pattern.permute.xlu0 0
    %374 = vperm.xlu0 %373, %v53
    %v375 = vpop.permute.xlu0 %374
    %378 = vset.pattern.permute.xlu0 0
    %379 = vperm.xlu0 %378, %v54
    %v380 = vpop.permute.xlu0 %379
    %383 = vset.pattern.permute.xlu0 0
    %384 = vperm.xlu0 %383, %v55
    %v385 = vpop.permute.xlu0 %384
    %388 = vset.pattern.permute.xlu0 0
    %389 = vperm.xlu0 %388, %v56
    %v390 = vpop.permute.xlu0 %389
    %393 = vset.pattern.permute.xlu0 0
    %394 = vperm.xlu0 %393, %v57
    %v395 = vpop.permute.xlu0 %394
    %398 = vset.pattern.permute.xlu0 0
    %399 = vperm.xlu0 %398, %v58
    %v400 = vpop.permute.xlu0 %399
    %403 = vset.pattern.permute.xlu0 0
    %404 = vperm.xlu0 %403, %v59
    %v405 = vpop.permute.xlu0 %404
    %v407 = vmul.f32 %v359, %v370
    %v408 = vmul.f32 %v360, %v375
    %v409 = vmul.f32 %v361, %v380
    %v410 = vmul.f32 %v362, %v385
    %v411 = vmul.f32 %v363, %v390
    %v412 = vmul.f32 %v364, %v395
    %v413 = vmul.f32 %v365, %v400
    %v414 = vmul.f32 %v366, %v405
    %v415 = vadd.f32 %v407, %v408
    %v416 = vadd.f32 %v415, %v409
    %v417 = vadd.f32 %v416, %v410
    %v418 = vadd.f32 %v417, %v411
    %v419 = vadd.f32 %v418, %v412
    %v420 = vadd.f32 %v419, %v413
    %v421 = vadd.f32 %v420, %v414
    %v422 = vrot.slane %v421, 4
    %v423 = vadd.f32 %v421, %v422
    %v424 = vrot.slane %v423, 2
    %v425 = vadd.f32 %v423, %v424
    %v426 = vrot.slane %v425, 1
    %v427 = vadd.f32 %v425, %v426
    %v428 = vstv %s60
    %v429 = vadd.f32 %v427, %v428
    %430 = vst [vmem:[#allocation3] sm:$0x1] %v429
    // Predicated region
    $region30: #{tpu_custom_call.1} parent=1 // pred_check
      _
    $region31: #{tpu_custom_call.1} parent=1 // pred_check_branch
      %432 = sbr.rel (0) target = $region33
    $region32: #{tpu_custom_call.1} parent=1 // pred_region
      %s434 = ssub.s32 16, 16
      %435 = vsyncadd [#allocation4], %s434
      %s437 = sshll.u32 [#allocation3], 4
      %s438 = int_to_ptr.vmem [resolvable:$true] %s437
      %440 = dma.vmem_to_hbm [thread:$0]  %s438, 16, %s7, [#allocation4]
    $region33: #{tpu_custom_call.1} parent=1 // pred_fallthru
      _
    // Predicated region
    $region34: #{tpu_custom_call.1} parent=1 // pred_check
      _
    $region35: #{tpu_custom_call.1} parent=1 // pred_check_branch
      %442 = sbr.rel (0) target = $region37
    $region36: #{tpu_custom_call.1} parent=1 // pred_region
      %443 = dma.done [#allocation4], 16
    $region37: #{tpu_custom_call.1} parent=1 // pred_fallthru
      _
    %444 = vsyncpa [#allocation4], 1

</llo_original>
